<compile_context>
chip_gen: v7x
topology: tpu7x:2x2x1
jax: 0.10.0
libtpu: 0.0.40
codegen_flags: <defaults>
</compile_context>

<pallas_src>
import math
import functools

import jax
import jax.numpy as jnp
from jax.experimental import pallas as pl
from jax.experimental.pallas import tpu as pltpu


def _qkv_proj_kernel(x_ref, w_ref, b_ref, o_ref):
    """Packed Q|K|V projection: (TS, D) @ (D, 3*H*R[pad]) + bias -> bf16."""
    y = jnp.dot(x_ref[...], w_ref[...], preferred_element_type=jnp.float32)
    o_ref[...] = (y + b_ref[...]).astype(o_ref.dtype)


def _attention_kernel(q_ref, k_ref, v_ref, wo_ref, bo_ref, o_ref, *, repr_dim):
    """Per-Q-tile attention + fused head-concat/reshapeLinear (single KV step)."""
    # q_ref: (H, TQ, R) bf16 ; k_ref / v_ref: (H, S, R) bf16 (resident)
    # wo_ref: (H, R, P_out) bf16 ; bo_ref: (1, P_out) f32 ; o_ref: (TQ, P_out) f32
    # sim_h = Q_h @ K_h^T : contract feature axes directly (no explicit transpose).
    s = jnp.einsum('hqr,hkr->hqk', q_ref[...], k_ref[...],
                   preferred_element_type=jnp.float32)            # (H, TQ, S) f32

    # Plain softmax over the key axis (== dim=1 of the per-head (S, S) sim matrix).
    m = jnp.max(s, axis=-1, keepdims=True)
    p = jnp.exp(s - m)
    l = jnp.sum(p, axis=-1, keepdims=True)                        # (H, TQ, 1)

    # head_h = (softmax(sim)_h / sqrt(R)) @ V_h ; the row-wise 1/(l*sqrt(R)) is folded in
    # AFTER the P@V matmul (fewer elementwise ops: (H,TQ,R) instead of (H,TQ,S)).
    pv = jnp.einsum('hqk,hkr->hqr', p.astype(jnp.bfloat16), v_ref[...],
                    preferred_element_type=jnp.float32)           # (H, TQ, R) f32
    inv = pl.reciprocal(l * math.sqrt(repr_dim), approx=False)    # exact; only H*TQ values
    heads = (pv * inv).astype(jnp.bfloat16)

    # Head-concat + reshapeLinear fused: out = sum_h head_h @ Wo_h + bias.
    # One batched MXU matmul over heads + a cheap reduction over the major head axis.
    proj = jnp.einsum('hqr,hrp->hqp', heads, wo_ref[...],
                      preferred_element_type=jnp.float32)         # (H, TQ, P_out)
    o_ref[...] = (jnp.sum(proj, axis=0) + bo_ref[...]).astype(o_ref.dtype)


def _pick_tile(s, target):
    t = min(target, s)
    while t > 1:
        if s % t == 0 and t % 8 == 0:
            return t
        t -= 1
    return s


def multi_head_attention(x, wq, bq, wk, bk, wv, bv, wo, bo, *, tq=128, proj_tile=256):
    """Forward pass of the PyTorch MultiHeadAttention module.

    x : (S, D_in) f32
    wq/wk/wv : (H, R, D_in) per-head nn.Linear weights ; bq/bk/bv : (H, R)
    wo : (R_out, H*R) reshapeLinear weight ; bo : (R_out,)
    """
    # TODO(synk): the num_heads==1 skip-reshapeLinear branch (which references an undefined
    # `force_linear` in the original forward) is not implemented; the default num_heads>1 path
    # (always apply reshapeLinear) is what this computes.
    S, D = x.shape
    H, R, _ = wq.shape
    R_out = wo.shape[0]

    def pad128(n):
        return ((n + 127) // 128) * 128

    HR = H * R
    P_qkv = pad128(3 * HR)          # lane-dense packed QKV width
    P_out = pad128(R_out)           # lane-dense final output width

    tq = _pick_tile(S, tq)
    ts = _pick_tile(S, proj_tile)

    x_bf = x.astype(jnp.bfloat16)

    # ---- host-side weight repacking (layout plumbing, runs once) ----
    def pack(w):                    # (H, R, D) -> (D, H*R), head-major columns
        return jnp.transpose(w, (2, 0, 1)).reshape(D, HR)

    w_qkv = jnp.concatenate([pack(wq), pack(wk), pack(wv)], axis=1)          # (D, 3HR)
    w_qkv = jnp.pad(w_qkv, ((0, 0), (0, P_qkv - 3 * HR))).astype(jnp.bfloat16)
    b_qkv = jnp.concatenate([bq.reshape(-1), bk.reshape(-1), bv.reshape(-1)])
    b_qkv = jnp.pad(b_qkv, (0, P_qkv - 3 * HR)).reshape(1, P_qkv).astype(jnp.float32)

    wo_p = jnp.pad(wo.T.reshape(H, R, R_out),
                   ((0, 0), (0, 0), (0, P_out - R_out))).astype(jnp.bfloat16)  # (H, R, P_out)
    bo_p = jnp.pad(bo, (0, P_out - R_out)).reshape(1, P_out).astype(jnp.float32)

    # ---- kernel 1: packed QKV projection (hoisted out of the attention grid) ----
    proj_cost = pl.CostEstimate(
        flops=int(2 * S * D * 3 * HR),
        transcendentals=0,
        bytes_accessed=int(S * D * 2 + D * P_qkv * 2 + P_qkv * 4 + S * P_qkv * 2))

    qkv = pl.pallas_call(
        _qkv_proj_kernel,
        out_shape=jax.ShapeDtypeStruct((S, P_qkv), jnp.bfloat16),
        grid_spec=pltpu.PrefetchScalarGridSpec(
            num_scalar_prefetch=0,
            grid=(S // ts,),
            in_specs=[
                pl.BlockSpec((ts, D), lambda i: (i, 0)),                      # x tile
                pl.BlockSpec((D, P_qkv), lambda i: (0, 0),
                             pipeline_mode=pl.Buffered(1)),                   # packed W (resident)
                pl.BlockSpec((1, P_qkv), lambda i: (0, 0),
                             pipeline_mode=pl.Buffered(1)),                   # packed bias
            ],
            out_specs=pl.BlockSpec((ts, P_qkv), lambda i: (i, 0)),
        ),
        compiler_params=pltpu.CompilerParams(
            dimension_semantics=("parallel",),
            vmem_limit_bytes=32 * 1024 * 1024),
        cost_estimate=proj_cost,
    )(x_bf, w_qkv, b_qkv)

    # Relayout once (XLA side): (S, 3*H*R) -> three (H, S, R) tensors for batched attention.
    def split(a):
        return jnp.transpose(a.reshape(S, H, R), (1, 0, 2))

    q = split(qkv[:, :HR])
    k = split(qkv[:, HR:2 * HR])
    v = split(qkv[:, 2 * HR:3 * HR])

    # ---- kernel 2: attention + fused reshapeLinear, grid over Q tiles, single KV step ----
    attn_cost = pl.CostEstimate(
        flops=int(4 * H * S * S * R + 2 * S * H * R * P_out),
        transcendentals=int(H * S * S),
        bytes_accessed=int(3 * H * S * R * 2 + H * R * P_out * 2 + P_out * 4 + S * P_out * 4))

    kernel = functools.partial(_attention_kernel, repr_dim=R)
    out_padded = pl.pallas_call(
        kernel,
        out_shape=jax.ShapeDtypeStruct((S, P_out), jnp.float32),
        grid_spec=pltpu.PrefetchScalarGridSpec(
            num_scalar_prefetch=0,
            grid=(S // tq,),
            in_specs=[
                pl.BlockSpec((H, tq, R), lambda i: (0, i, 0)),                # Q tile
                pl.BlockSpec((H, S, R), lambda i: (0, 0, 0),
                             pipeline_mode=pl.Buffered(1)),                   # K (resident)
                pl.BlockSpec((H, S, R), lambda i: (0, 0, 0),
                             pipeline_mode=pl.Buffered(1)),                   # V (resident)
                pl.BlockSpec((H, R, P_out), lambda i: (0, 0, 0),
                             pipeline_mode=pl.Buffered(1)),                   # reshapeLinear W
                pl.BlockSpec((1, P_out), lambda i: (0, 0),
                             pipeline_mode=pl.Buffered(1)),                   # reshapeLinear b
            ],
            out_specs=pl.BlockSpec((tq, P_out), lambda i: (i, 0)),
        ),
        compiler_params=pltpu.CompilerParams(
            dimension_semantics=("parallel",),
            vmem_limit_bytes=32 * 1024 * 1024),
        cost_estimate=attn_cost,
    )(q, k, v, wo_p, bo_p)

    return out_padded[:, :R_out]


def _reference(x, wq, bq, wk, bk, wv, bv, wo, bo):
    H, R, _ = wq.shape
    heads = []
    for h in range(H):
        q = x @ wq[h].T + bq[h]
        k = x @ wk[h].T + bk[h]
        v = x @ wv[h].T + bv[h]
        sim = q @ k.T
        sm = jax.nn.softmax(sim, axis=1) / math.sqrt(R)
        heads.append(sm @ v)
    cat = jnp.concatenate(heads, axis=1)
    return cat @ wo.T + bo


if __name__ == "__main__":
    # Small shapes consistent with the module: seq=256, input_size=32, repr_dim=32,
    # num_heads=6 (module default). Exercises a 2-step Q grid in the attention kernel.
    S, D_IN, R, H = 256, 32, 32, 6

    key = jax.random.PRNGKey(0)
    ks = jax.random.split(key, 9)
    x = jax.random.normal(ks[0], (S, D_IN), dtype=jnp.float32)

    # nn.Linear-style uniform(-1/sqrt(fan_in), 1/sqrt(fan_in)) init.
    b1 = 1.0 / math.sqrt(D_IN)
    wq = jax.random.uniform(ks[1], (H, R, D_IN), jnp.float32, -b1, b1)
    bq = jax.random.uniform(ks[2], (H, R), jnp.float32, -b1, b1)
    wk = jax.random.uniform(ks[3], (H, R, D_IN), jnp.float32, -b1, b1)
    bk = jax.random.uniform(ks[4], (H, R), jnp.float32, -b1, b1)
    wv = jax.random.uniform(ks[5], (H, R, D_IN), jnp.float32, -b1, b1)
    bv = jax.random.uniform(ks[6], (H, R), jnp.float32, -b1, b1)
    b2 = 1.0 / math.sqrt(H * R)
    wo = jax.random.uniform(ks[7], (R, H * R), jnp.float32, -b2, b2)
    bo = jax.random.uniform(ks[8], (R,), jnp.float32, -b2, b2)

    out = multi_head_attention(x, wq, bq, wk, bk, wv, bv, wo, bo)
    out = jax.block_until_ready(out)

    ref = _reference(x, wq, bq, wk, bk, wv, bv, wo, bo)
    assert out.shape == (S, R)
    # bf16 MXU feeds (Q/K/V, probabilities, heads) -> relaxed tolerance vs the f32 reference.
    max_err = float(jnp.max(jnp.abs(out - ref)))
    assert jnp.allclose(out, ref, atol=2e-2, rtol=2e-2), (
        "mismatch vs reference, max abs err = %e" % max_err)

    print("KERNEL_OK")
</pallas_src>

<mosaic_0001>
module attributes {stable_mosaic.version = 11 : i64} {
  func.func @_qkv_proj_kernel(%arg0: i32, %arg1: memref<256x32xbf16, #tpu.memory_space<vmem>>, %arg2: memref<32x640xbf16, #tpu.memory_space<vmem>>, %arg3: memref<1x640xf32, #tpu.memory_space<vmem>>, %arg4: memref<256x640xbf16, #tpu.memory_space<vmem>>) attributes {dimension_semantics = [#tpu.dimension_semantics<parallel>], iteration_bounds = array<i64: 1>, scalar_prefetch = 0 : i64, scratch_operands = 0 : i64, tpu.core_type = #tpu.core_type<tc>, window_params = [{transform_indices = @transform_0, window_bounds = array<i64: 256, 32>}, {pipeline_mode = #tpu.pipeline_mode<synchronous>, transform_indices = @transform_1, window_bounds = array<i64: 32, 640>}, {pipeline_mode = #tpu.pipeline_mode<synchronous>, transform_indices = @transform_2, window_bounds = array<i64: 1, 640>}, {transform_indices = @transform_3, window_bounds = array<i64: 256, 640>}]} {
    %c0 = arith.constant 0 : index
    %c0_0 = arith.constant 0 : index
    %0 = vector.load %arg1[%c0, %c0_0] : memref<256x32xbf16, #tpu.memory_space<vmem>>, vector<256x32xbf16>
    %c0_1 = arith.constant 0 : index
    %c0_2 = arith.constant 0 : index
    %1 = vector.load %arg2[%c0_1, %c0_2] : memref<32x640xbf16, #tpu.memory_space<vmem>>, vector<32x640xbf16>
    %cst = arith.constant dense<0.000000e+00> : vector<256x640xf32>
    %2 = tpu.matmul %0, %1, %cst {dimension_numbers = #tpu.dot_dimension_numbers<[1], [0], [0], [1], [0, 0, 1, 1], [], []>} : vector<256x32xbf16>, vector<32x640xbf16>, vector<256x640xf32> -> vector<256x640xf32>
    %c0_3 = arith.constant 0 : index
    %c0_4 = arith.constant 0 : index
    %3 = vector.load %arg3[%c0_3, %c0_4] : memref<1x640xf32, #tpu.memory_space<vmem>>, vector<1x640xf32>
    %4 = vector.broadcast %3 : vector<1x640xf32> to vector<256x640xf32>
    %5 = arith.addf %2, %4 : vector<256x640xf32>
    %6 = arith.truncf %5 : vector<256x640xf32> to vector<256x640xbf16>
    %c0_5 = arith.constant 0 : index
    %c0_6 = arith.constant 0 : index
    %7 = vector.load %arg4[%c0_5, %c0_6] : memref<256x640xbf16, #tpu.memory_space<vmem>>, vector<256x640xbf16>
    tpu.vector_store %arg4[%c0_5, %c0_6], %6 {strides = array<i32>} : memref<256x640xbf16, #tpu.memory_space<vmem>>, vector<256x640xbf16>,
    return
  }
  func.func @transform_0(%arg0: i32) -> (i32, i32) {
    %c0_i32 = arith.constant 0 : i32
    %c0_i32_0 = arith.constant 0 : i32
    return %arg0, %c0_i32 : i32, i32
  }
  func.func @transform_1(%arg0: i32) -> (i32, i32) {
    %c0_i32 = arith.constant 0 : i32
    %c0_i32_0 = arith.constant 0 : i32
    %c0_i32_1 = arith.constant 0 : i32
    return %c0_i32, %c0_i32_0 : i32, i32
  }
  func.func @transform_2(%arg0: i32) -> (i32, i32) {
    %c0_i32 = arith.constant 0 : i32
    %c0_i32_0 = arith.constant 0 : i32
    %c0_i32_1 = arith.constant 0 : i32
    return %c0_i32, %c0_i32_0 : i32, i32
  }
  func.func @transform_3(%arg0: i32) -> (i32, i32) {
    %c0_i32 = arith.constant 0 : i32
    %c0_i32_0 = arith.constant 0 : i32
    return %arg0, %c0_i32 : i32, i32
  }
}

</mosaic_0001>

<llo_original>
// kernel: tpu_custom_call.1
$region0: #{tpu_custom_call.1}
  #allocation0 [shape = 'u32[]', space=smem, size = 0x4, offset = 0x4, fixed_abs, tag = 'smem constant byte address 0x4 - core index']
  #allocation1 [shape = 'u32[144,128]{1,0:T(1,128)}', space=vmem, size = 0x12000, scoped, tag = 'internal scratch']
  %s0 = inlined_call_operand.vmem [shape: bf16[256,32], index: 0, kind: input, shape index: {}]
  %s1 = inlined_call_operand.vmem [shape: bf16[32,640], index: 1, kind: input, shape index: {}]
  %s2 = inlined_call_operand.vmem [shape: f32[1,640], index: 2, kind: input, shape index: {}]
  %s3 = inlined_call_operand.hbm [shape: bf16[256,640], index: 3, kind: output, shape index: {}]
  %s4 = sld [smem:[#allocation0]]
  $region22: #{tpu_custom_call.1} parent=0
    _
  %s6 = ssub.s32 1, %s4
  %s7 = scalar_select 0, %s6, %s4
  $region1: #{tpu_custom_call.1} parent=0
    #allocation2 [shape = 'u8[327680]{0}', space=vmem, size = 0x50000, scoped, tag = 'output window, operand 0, single buffered']
    #allocation3 [shape = 's32[1]{0}', space=sflag, size = 0x4, scoped, tag = 'scoped memory for tpu_custom_call.1']
    %8 = vsyncpa [#allocation3], 0
    // Predicated region
    $region2: #{tpu_custom_call.1} parent=1 // pred_check
      _
    $region3: #{tpu_custom_call.1} parent=1 // pred_check_branch
      %10 = sbr.rel (0) target = $region5
    $region4: #{tpu_custom_call.1} parent=1 // pred_region
      _
    $region5: #{tpu_custom_call.1} parent=1 // pred_fallthru
      _
    // Predicated region
    $region6: #{tpu_custom_call.1} parent=1 // pred_check
      _
    $region7: #{tpu_custom_call.1} parent=1 // pred_check_branch
      %12 = sbr.rel (0) target = $region9
    $region8: #{tpu_custom_call.1} parent=1 // pred_region
      _
    $region9: #{tpu_custom_call.1} parent=1 // pred_fallthru
      _
    // Predicated region
    $region10: #{tpu_custom_call.1} parent=1 // pred_check
      _
    $region11: #{tpu_custom_call.1} parent=1 // pred_check_branch
      %14 = sbr.rel (0) target = $region13
    $region12: #{tpu_custom_call.1} parent=1 // pred_region
      _
    $region13: #{tpu_custom_call.1} parent=1 // pred_fallthru
      _
    %v16 = vld [vmem:[%s0] sm:$0xf]
    %v17 = vld [vmem:[%s0 + $0x4] sm:$0xf]
    %v18 = vld [vmem:[%s0 + $0x8] sm:$0xf]
    %v19 = vld [vmem:[%s0 + $0xc] sm:$0xf]
    %v20 = vld [vmem:[%s0 + $0x10] sm:$0xf]
    %v21 = vld [vmem:[%s0 + $0x14] sm:$0xf]
    %v22 = vld [vmem:[%s0 + $0x18] sm:$0xf]
    %v23 = vld [vmem:[%s0 + $0x1c] sm:$0xf]
    %v24 = vld [vmem:[%s0 + $0x20] sm:$0xf]
    %v25 = vld [vmem:[%s0 + $0x24] sm:$0xf]
    %v26 = vld [vmem:[%s0 + $0x28] sm:$0xf]
    %v27 = vld [vmem:[%s0 + $0x2c] sm:$0xf]
    %v28 = vld [vmem:[%s0 + $0x30] sm:$0xf]
    %v29 = vld [vmem:[%s0 + $0x34] sm:$0xf]
    %v30 = vld [vmem:[%s0 + $0x38] sm:$0xf]
    %v31 = vld [vmem:[%s0 + $0x3c] sm:$0xf]
    %v32 = vld [vmem:[%s0 + $0x40] sm:$0xf]
    %v33 = vld [vmem:[%s0 + $0x44] sm:$0xf]
    %v34 = vld [vmem:[%s0 + $0x48] sm:$0xf]
    %v35 = vld [vmem:[%s0 + $0x4c] sm:$0xf]
    %v36 = vld [vmem:[%s0 + $0x50] sm:$0xf]
    %v37 = vld [vmem:[%s0 + $0x54] sm:$0xf]
    %v38 = vld [vmem:[%s0 + $0x58] sm:$0xf]
    %v39 = vld [vmem:[%s0 + $0x5c] sm:$0xf]
    %v40 = vld [vmem:[%s0 + $0x60] sm:$0xf]
    %v41 = vld [vmem:[%s0 + $0x64] sm:$0xf]
    %v42 = vld [vmem:[%s0 + $0x68] sm:$0xf]
    %v43 = vld [vmem:[%s0 + $0x6c] sm:$0xf]
    %v44 = vld [vmem:[%s0 + $0x70] sm:$0xf]
    %v45 = vld [vmem:[%s0 + $0x74] sm:$0xf]
    %v46 = vld [vmem:[%s0 + $0x78] sm:$0xf]
    %v47 = vld [vmem:[%s0 + $0x7c] sm:$0xf]
    %v48 = vld [vmem:[%s1] sm:$0xff]
    %v49 = vld [vmem:[%s1 + $0x8] sm:$0xff]
    %v50 = vld [vmem:[%s1 + $0x10] sm:$0xf]
    %v51 = vld [vmem:[%s1 + $0x14] sm:$0xff]
    %v52 = vld [vmem:[%s1 + $0x1c] sm:$0xff]
    %v53 = vld [vmem:[%s1 + $0x24] sm:$0xf]
    %v54 = vld [vmem:[%s1 + $0x28] sm:$0xff]
    %v55 = vld [vmem:[%s1 + $0x30] sm:$0xff]
    %v56 = vld [vmem:[%s1 + $0x38] sm:$0xf]
    %v57 = vld [vmem:[%s1 + $0x3c] sm:$0xff]
    %v58 = vld [vmem:[%s1 + $0x44] sm:$0xff]
    %v59 = vld [vmem:[%s1 + $0x4c] sm:$0xf]
    %v60 = vld [vmem:[%s2] sm:$0x1f]
    %v62 = vlaneseq
    %v63 = vshrl.u32 %v62, 7
    %v64 = vsub.s32 0, %v63
    %v65 = vrot.slane %v60, %v64
    %v66 = vlaneseq
    %v67 = vshrl.u32 %v66, 7
    %v68 = vsub.s32 1, %v67
    %v69 = vrot.slane %v60, %v68
    %v70 = vlaneseq
    %v71 = vshrl.u32 %v70, 7
    %v72 = vsub.s32 2, %v71
    %v73 = vrot.slane %v60, %v72
    %v74 = vlaneseq
    %v75 = vshrl.u32 %v74, 7
    %v76 = vsub.s32 3, %v75
    %v77 = vrot.slane %v60, %v76
    %v78 = vlaneseq
    %v79 = vshrl.u32 %v78, 7
    %v80 = vsub.s32 4, %v79
    %v81 = vrot.slane %v60, %v80
    %v119 = vunpack.c.l.b16 %v16
    %v120 = vunpack.c.l.b16 %v17
    %v121 = vunpack.c.l.b16 %v18
    %v122 = vunpack.c.l.b16 %v19
    %v123 = vunpack.c.l.b16 %v20
    %v124 = vunpack.c.l.b16 %v21
    %v125 = vunpack.c.l.b16 %v22
    %v126 = vunpack.c.l.b16 %v23
    %v127 = vunpack.c.l.b16 %v24
    %v128 = vunpack.c.l.b16 %v25
    %v129 = vunpack.c.l.b16 %v26
    %v130 = vunpack.c.l.b16 %v27
    %v131 = vunpack.c.l.b16 %v28
    %v132 = vunpack.c.l.b16 %v29
    %v133 = vunpack.c.l.b16 %v30
    %v134 = vunpack.c.l.b16 %v31
    %v135 = vunpack.c.l.b16 %v32
    %v136 = vunpack.c.l.b16 %v33
    %v137 = vunpack.c.l.b16 %v34
    %v138 = vunpack.c.l.b16 %v35
    %v139 = vunpack.c.l.b16 %v36
    %v140 = vunpack.c.l.b16 %v37
    %v141 = vunpack.c.l.b16 %v38
    %v142 = vunpack.c.l.b16 %v39
    %v143 = vunpack.c.l.b16 %v40
    %v144 = vunpack.c.l.b16 %v41
    %v145 = vunpack.c.l.b16 %v42
    %v146 = vunpack.c.l.b16 %v43
    %v147 = vunpack.c.l.b16 %v44
    %v148 = vunpack.c.l.b16 %v45
    %v149 = vunpack.c.l.b16 %v46
    %v150 = vunpack.c.l.b16 %v47
    %v151 = vpack.c.b16 %v120, %v119
    %v152 = vpack.c.b16 %v122, %v121
    %v153 = vpack.c.b16 %v124, %v123
    %v154 = vpack.c.b16 %v126, %v125
    %v155 = vpack.c.b16 %v128, %v127
    %v156 = vpack.c.b16 %v130, %v129
    %v157 = vpack.c.b16 %v132, %v131
    %v158 = vpack.c.b16 %v134, %v133
    %v159 = vpack.c.b16 %v136, %v135
    %v160 = vpack.c.b16 %v138, %v137
    %v161 = vpack.c.b16 %v140, %v139
    %v162 = vpack.c.b16 %v142, %v141
    %v163 = vpack.c.b16 %v144, %v143
    %v164 = vpack.c.b16 %v146, %v145
    %v165 = vpack.c.b16 %v148, %v147
    %v166 = vpack.c.b16 %v150, %v149
    %v179 = vunpack.c.l.b16 %v48
    %v180 = vunpack.c.h.b16 %v48
    %v181 = vunpack.c.l.b16 %v49
    %v182 = vunpack.c.h.b16 %v49
    %v183 = vunpack.c.l.b16 %v50
    %v184 = vunpack.c.l.b16 %v51
    %v185 = vunpack.c.h.b16 %v51
    %v186 = vunpack.c.l.b16 %v52
    %v187 = vunpack.c.h.b16 %v52
    %v188 = vunpack.c.l.b16 %v53
    %v189 = vunpack.c.l.b16 %v54
    %v190 = vunpack.c.h.b16 %v54
    %v191 = vunpack.c.l.b16 %v55
    %v192 = vunpack.c.h.b16 %v55
    %v193 = vunpack.c.l.b16 %v56
    %v194 = vunpack.c.l.b16 %v57
    %v195 = vunpack.c.h.b16 %v57
    %v196 = vunpack.c.l.b16 %v58
    %v197 = vunpack.c.h.b16 %v58
    %v198 = vunpack.c.l.b16 %v59
    %v199 = vpack.c.b16 %v184, %v179
    %v200 = vpack.c.b16 %v185, %v180
    %v201 = vpack.c.b16 %v186, %v181
    %v202 = vpack.c.b16 %v187, %v182
    %v203 = vpack.c.b16 %v188, %v183
    %v204 = vpack.c.b16 %v194, %v189
    %v205 = vpack.c.b16 %v195, %v190
    %v206 = vpack.c.b16 %v196, %v191
    %v207 = vpack.c.b16 %v197, %v192
    %v208 = vpack.c.b16 %v198, %v193
    %vm219 = vcmask 261120
    %v221 = vsel %vm219, %v151, 0
    %v224 = vsel %vm219, %v152, 0
    %v227 = vsel %vm219, %v153, 0
    %v230 = vsel %vm219, %v154, 0
    %v233 = vsel %vm219, %v155, 0
    %v236 = vsel %vm219, %v156, 0
    %v239 = vsel %vm219, %v157, 0
    %v242 = vsel %vm219, %v158, 0
    %v245 = vsel %vm219, %v159, 0
    %v248 = vsel %vm219, %v160, 0
    %v251 = vsel %vm219, %v161, 0
    %v254 = vsel %vm219, %v162, 0
    %v257 = vsel %vm219, %v163, 0
    %v260 = vsel %vm219, %v164, 0
    %v263 = vsel %vm219, %v165, 0
    %v266 = vsel %vm219, %v166, 0
    %268 = vmatprep.subr.bf16.mxu0 %v200
    %269 = vmatpush1.bf16.msra.mxu0 %v199
    %270 = vmatprep.subr.bf16.mxu0 %v205
    %271 = vmatpush1.bf16.msra.mxu0 %v204
    %272 = vmatprep.subr.bf16.mxu0 0
    %273 = vmatpush1.bf16.msra.mxu0 0
    %274 = vmatprep.subr.bf16.mxu0 0
    %275 = vmatpush1.bf16.msra.mxu0 0
    %276 = vmatprep.subr.bf16.mxu0 0
    %277 = vmatpush1.bf16.msra.mxu0 0
    %278 = vmatprep.subr.bf16.mxu0 0
    %279 = vmatpush1.bf16.msra.mxu0 0
    %280 = vmatprep.subr.bf16.mxu0 0
    %281 = vmatpush1.bf16.msra.mxu0 0
    %282 = vmatprep.subr.bf16.mxu0 0
    %283 = vmatpush1.bf16.msra.mxu0 0
    %284 = vmatprep.subr.bf16.mxu0 0
    %285 = vmatpush1.bf16.msra.mxu0 0
    %286 = vmatprep.subr.bf16.mxu0 0
    %287 = vmatpush1.bf16.msra.mxu0 0
    %288 = vmatprep.subr.bf16.mxu0 0
    %289 = vmatpush1.bf16.msra.mxu0 0
    %290 = vmatprep.subr.bf16.mxu0 0
    %291 = vmatpush1.bf16.msra.mxu0 0
    %292 = vmatprep.subr.bf16.mxu0 0
    %293 = vmatpush1.bf16.msra.mxu0 0
    %294 = vmatprep.subr.bf16.mxu0 0
    %295 = vmatpush1.bf16.msra.mxu0 0
    %296 = vmatprep.subr.bf16.mxu0 0
    %297 = vmatpush1.bf16.msra.mxu0 0
    %298 = vmatprep.subr.bf16.mxu0 0
    %299 = vmatpush1.bf16.msra.mxu0 0
    %300 = vmatprep.mubr.bf16.mxu0 0
    %301 = vmatmul.mubr.bf16.gmra.mrb[0].mxu0 %v221
    %v302 = vpop.f32.mrb[0].mxu0
    %v303 = vadd.f32 %v65, %v302
    %v304 = vpop.f32.mrb[0].mxu0
    %v305 = vadd.f32 %v69, %v304
    %v306 = vpop.f32.mrb[0].mxu0
    %v307 = vadd.f32 %v65, %v306
    %v308 = vpop.f32.mrb[0].mxu0
    %v309 = vadd.f32 %v69, %v308
    %310 = vmatprep.mubr.bf16.mxu0 0
    %311 = vmatmul.mubr.bf16.gmra.mrb[0].mxu0 %v224
    %v312 = vpop.f32.mrb[0].mxu0
    %v313 = vadd.f32 %v65, %v312
    %v314 = vpop.f32.mrb[0].mxu0
    %v315 = vadd.f32 %v69, %v314
    %v316 = vpop.f32.mrb[0].mxu0
    %v317 = vadd.f32 %v65, %v316
    %v318 = vpop.f32.mrb[0].mxu0
    %v319 = vadd.f32 %v69, %v318
    %320 = vmatprep.mubr.bf16.mxu0 0
    %321 = vmatmul.mubr.bf16.gmra.mrb[0].mxu0 %v227
    %v322 = vpop.f32.mrb[0].mxu0
    %v323 = vadd.f32 %v65, %v322
    %v324 = vpop.f32.mrb[0].mxu0
    %v325 = vadd.f32 %v69, %v324
    %v326 = vpop.f32.mrb[0].mxu0
    %v327 = vadd.f32 %v65, %v326
    %v328 = vpop.f32.mrb[0].mxu0
    %v329 = vadd.f32 %v69, %v328
    %330 = vmatprep.mubr.bf16.mxu0 0
    %331 = vmatmul.mubr.bf16.gmra.mrb[0].mxu0 %v230
    %v332 = vpop.f32.mrb[0].mxu0
    %v333 = vadd.f32 %v65, %v332
    %v334 = vpop.f32.mrb[0].mxu0
    %v335 = vadd.f32 %v69, %v334
    %v336 = vpop.f32.mrb[0].mxu0
    %v337 = vadd.f32 %v65, %v336
    %v338 = vpop.f32.mrb[0].mxu0
    %v339 = vadd.f32 %v69, %v338
    %340 = vmatprep.mubr.bf16.mxu0 0
    %341 = vmatmul.mubr.bf16.gmra.mrb[0].mxu0 %v233
    %v342 = vpop.f32.mrb[0].mxu0
    %v343 = vadd.f32 %v65, %v342
    %v344 = vpop.f32.mrb[0].mxu0
    %v345 = vadd.f32 %v69, %v344
    %v346 = vpop.f32.mrb[0].mxu0
    %v347 = vadd.f32 %v65, %v346
    %v348 = vpop.f32.mrb[0].mxu0
    %v349 = vadd.f32 %v69, %v348
    %350 = vmatprep.mubr.bf16.mxu0 0
    %351 = vmatmul.mubr.bf16.gmra.mrb[0].mxu0 %v236
    %v352 = vpop.f32.mrb[0].mxu0
    %v353 = vadd.f32 %v65, %v352
    %v354 = vpop.f32.mrb[0].mxu0
    %v355 = vadd.f32 %v69, %v354
    %v356 = vpop.f32.mrb[0].mxu0
    %v357 = vadd.f32 %v65, %v356
    %v358 = vpop.f32.mrb[0].mxu0
    %v359 = vadd.f32 %v69, %v358
    %360 = vmatprep.mubr.bf16.mxu0 0
    %361 = vmatmul.mubr.bf16.gmra.mrb[0].mxu0 %v239
    %v362 = vpop.f32.mrb[0].mxu0
    %v363 = vadd.f32 %v65, %v362
    %v364 = vpop.f32.mrb[0].mxu0
    %v365 = vadd.f32 %v69, %v364
    %v366 = vpop.f32.mrb[0].mxu0
    %v367 = vadd.f32 %v65, %v366
    %v368 = vpop.f32.mrb[0].mxu0
    %v369 = vadd.f32 %v69, %v368
    %370 = vmatprep.mubr.bf16.mxu0 0
    %371 = vmatmul.mubr.bf16.gmra.mrb[0].mxu0 %v242
    %v372 = vpop.f32.mrb[0].mxu0
    %v373 = vadd.f32 %v65, %v372
    %v374 = vpop.f32.mrb[0].mxu0
    %v375 = vadd.f32 %v69, %v374
    %v376 = vpop.f32.mrb[0].mxu0
    %v377 = vadd.f32 %v65, %v376
    %v378 = vpop.f32.mrb[0].mxu0
    %v379 = vadd.f32 %v69, %v378
    %380 = vmatprep.mubr.bf16.mxu0 0
    %381 = vmatmul.mubr.bf16.gmra.mrb[0].mxu0 %v245
    %v382 = vpop.f32.mrb[0].mxu0
    %v383 = vadd.f32 %v65, %v382
    %v384 = vpop.f32.mrb[0].mxu0
    %v385 = vadd.f32 %v69, %v384
    %v386 = vpop.f32.mrb[0].mxu0
    %v387 = vadd.f32 %v65, %v386
    %v388 = vpop.f32.mrb[0].mxu0
    %v389 = vadd.f32 %v69, %v388
    %390 = vmatprep.mubr.bf16.mxu0 0
    %391 = vmatmul.mubr.bf16.gmra.mrb[0].mxu0 %v248
    %v392 = vpop.f32.mrb[0].mxu0
    %v393 = vadd.f32 %v65, %v392
    %v394 = vpop.f32.mrb[0].mxu0
    %v395 = vadd.f32 %v69, %v394
    %v396 = vpop.f32.mrb[0].mxu0
    %v397 = vadd.f32 %v65, %v396
    %v398 = vpop.f32.mrb[0].mxu0
    %v399 = vadd.f32 %v69, %v398
    %400 = vmatprep.mubr.bf16.mxu0 0
    %401 = vmatmul.mubr.bf16.gmra.mrb[0].mxu0 %v251
    %v402 = vpop.f32.mrb[0].mxu0
    %v403 = vadd.f32 %v65, %v402
    %v404 = vpop.f32.mrb[0].mxu0
    %v405 = vadd.f32 %v69, %v404
    %v406 = vpop.f32.mrb[0].mxu0
    %v407 = vadd.f32 %v65, %v406
    %v408 = vpop.f32.mrb[0].mxu0
    %v409 = vadd.f32 %v69, %v408
    %410 = vmatprep.mubr.bf16.mxu0 0
    %411 = vmatmul.mubr.bf16.gmra.mrb[0].mxu0 %v254
    %v412 = vpop.f32.mrb[0].mxu0
    %v413 = vadd.f32 %v65, %v412
    %v414 = vpop.f32.mrb[0].mxu0
    %v415 = vadd.f32 %v69, %v414
    %v416 = vpop.f32.mrb[0].mxu0
    %v417 = vadd.f32 %v65, %v416
    %v418 = vpop.f32.mrb[0].mxu0
    %v419 = vadd.f32 %v69, %v418
    %420 = vmatprep.mubr.bf16.mxu0 0
    %421 = vmatmul.mubr.bf16.gmra.mrb[0].mxu0 %v257
    %v422 = vpop.f32.mrb[0].mxu0
    %v423 = vadd.f32 %v65, %v422
    %v424 = vpop.f32.mrb[0].mxu0
    %v425 = vadd.f32 %v69, %v424
    %v426 = vpop.f32.mrb[0].mxu0
    %v427 = vadd.f32 %v65, %v426
    %v428 = vpop.f32.mrb[0].mxu0
    %v429 = vadd.f32 %v69, %v428
    %430 = vmatprep.mubr.bf16.mxu0 0
    %431 = vmatmul.mubr.bf16.gmra.mrb[0].mxu0 %v260
    %v432 = vpop.f32.mrb[0].mxu0
    %v433 = vadd.f32 %v65, %v432
    %v434 = vpop.f32.mrb[0].mxu0
    %v435 = vadd.f32 %v69, %v434
    %v436 = vpop.f32.mrb[0].mxu0
    %v437 = vadd.f32 %v65, %v436
    %v438 = vpop.f32.mrb[0].mxu0
    %v439 = vadd.f32 %v69, %v438
    %440 = vmatprep.mubr.bf16.mxu0 0
    %441 = vmatmul.mubr.bf16.gmra.mrb[0].mxu0 %v263
    %v442 = vpop.f32.mrb[0].mxu0
    %v443 = vadd.f32 %v65, %v442
    %v444 = vpop.f32.mrb[0].mxu0
    %v445 = vadd.f32 %v69, %v444
    %v446 = vpop.f32.mrb[0].mxu0
    %v447 = vadd.f32 %v65, %v446
    %v448 = vpop.f32.mrb[0].mxu0
    %v449 = vadd.f32 %v69, %v448
    %450 = vmatprep.mubr.bf16.mxu0 0
    %451 = vmatmul.mubr.bf16.gmra.mrb[0].mxu0 %v266
    %v452 = vpop.f32.mrb[0].mxu0
    %v453 = vadd.f32 %v65, %v452
    %v454 = vpop.f32.mrb[0].mxu0
    %v455 = vadd.f32 %v69, %v454
    %v456 = vpop.f32.mrb[0].mxu0
    %v457 = vadd.f32 %v65, %v456
    %v458 = vpop.f32.mrb[0].mxu0
    %v459 = vadd.f32 %v69, %v458
    %460 = vdwg.mxu0
    %461 = vmatprep.subr.bf16.mxu0 %v202
    %462 = vmatpush1.bf16.msra.mxu0 %v201
    %463 = vmatprep.subr.bf16.mxu0 %v207
    %464 = vmatpush1.bf16.msra.mxu0 %v206
    %465 = vmatprep.subr.bf16.mxu0 0
    %466 = vmatpush1.bf16.msra.mxu0 0
    %467 = vmatprep.subr.bf16.mxu0 0
    %468 = vmatpush1.bf16.msra.mxu0 0
    %469 = vmatprep.subr.bf16.mxu0 0
    %470 = vmatpush1.bf16.msra.mxu0 0
    %471 = vmatprep.subr.bf16.mxu0 0
    %472 = vmatpush1.bf16.msra.mxu0 0
    %473 = vmatprep.subr.bf16.mxu0 0
    %474 = vmatpush1.bf16.msra.mxu0 0
    %475 = vmatprep.subr.bf16.mxu0 0
    %476 = vmatpush1.bf16.msra.mxu0 0
    %477 = vmatprep.subr.bf16.mxu0 0
    %478 = vmatpush1.bf16.msra.mxu0 0
    %479 = vmatprep.subr.bf16.mxu0 0
    %480 = vmatpush1.bf16.msra.mxu0 0
    %481 = vmatprep.subr.bf16.mxu0 0
    %482 = vmatpush1.bf16.msra.mxu0 0
    %483 = vmatprep.subr.bf16.mxu0 0
    %484 = vmatpush1.bf16.msra.mxu0 0
    %485 = vmatprep.subr.bf16.mxu0 0
    %486 = vmatpush1.bf16.msra.mxu0 0
    %487 = vmatprep.subr.bf16.mxu0 0
    %488 = vmatpush1.bf16.msra.mxu0 0
    %489 = vmatprep.subr.bf16.mxu0 0
    %490 = vmatpush1.bf16.msra.mxu0 0
    %491 = vmatprep.subr.bf16.mxu0 0
    %492 = vmatpush1.bf16.msra.mxu0 0
    %493 = vmatprep.mubr.bf16.mxu0 0
    %494 = vmatmul.mubr.bf16.gmra.mrb[0].mxu0 %v221
    %v495 = vpop.f32.mrb[0].mxu0
    %v496 = vadd.f32 %v73, %v495
    %v497 = vpop.f32.mrb[0].mxu0
    %v498 = vadd.f32 %v77, %v497
    %v499 = vpop.f32.mrb[0].mxu0
    %v500 = vadd.f32 %v73, %v499
    %v501 = vpop.f32.mrb[0].mxu0
    %v502 = vadd.f32 %v77, %v501
    %503 = vmatprep.mubr.bf16.mxu0 0
    %504 = vmatmul.mubr.bf16.gmra.mrb[0].mxu0 %v224
    %v505 = vpop.f32.mrb[0].mxu0
    %v506 = vadd.f32 %v73, %v505
    %v507 = vpop.f32.mrb[0].mxu0
    %v508 = vadd.f32 %v77, %v507
    %v509 = vpop.f32.mrb[0].mxu0
    %v510 = vadd.f32 %v73, %v509
    %v511 = vpop.f32.mrb[0].mxu0
    %v512 = vadd.f32 %v77, %v511
    %513 = vmatprep.mubr.bf16.mxu0 0
    %514 = vmatmul.mubr.bf16.gmra.mrb[0].mxu0 %v227
    %v515 = vpop.f32.mrb[0].mxu0
    %v516 = vadd.f32 %v73, %v515
    %v517 = vpop.f32.mrb[0].mxu0
    %v518 = vadd.f32 %v77, %v517
    %v519 = vpop.f32.mrb[0].mxu0
    %v520 = vadd.f32 %v73, %v519
    %v521 = vpop.f32.mrb[0].mxu0
    %v522 = vadd.f32 %v77, %v521
    %523 = vmatprep.mubr.bf16.mxu0 0
    %524 = vmatmul.mubr.bf16.gmra.mrb[0].mxu0 %v230
    %v525 = vpop.f32.mrb[0].mxu0
    %v526 = vadd.f32 %v73, %v525
    %v527 = vpop.f32.mrb[0].mxu0
    %v528 = vadd.f32 %v77, %v527
    %v529 = vpop.f32.mrb[0].mxu0
    %v530 = vadd.f32 %v73, %v529
    %v531 = vpop.f32.mrb[0].mxu0
    %v532 = vadd.f32 %v77, %v531
    %533 = vmatprep.mubr.bf16.mxu0 0
    %534 = vmatmul.mubr.bf16.gmra.mrb[0].mxu0 %v233
    %v535 = vpop.f32.mrb[0].mxu0
    %v536 = vadd.f32 %v73, %v535
    %v537 = vpop.f32.mrb[0].mxu0
    %v538 = vadd.f32 %v77, %v537
    %v539 = vpop.f32.mrb[0].mxu0
    %v540 = vadd.f32 %v73, %v539
    %v541 = vpop.f32.mrb[0].mxu0
    %v542 = vadd.f32 %v77, %v541
    %543 = vmatprep.mubr.bf16.mxu0 0
    %544 = vmatmul.mubr.bf16.gmra.mrb[0].mxu0 %v236
    %v545 = vpop.f32.mrb[0].mxu0
    %v546 = vadd.f32 %v73, %v545
    %v547 = vpop.f32.mrb[0].mxu0
    %v548 = vadd.f32 %v77, %v547
    %v549 = vpop.f32.mrb[0].mxu0
    %v550 = vadd.f32 %v73, %v549
    %v551 = vpop.f32.mrb[0].mxu0
    %v552 = vadd.f32 %v77, %v551
    %553 = vmatprep.mubr.bf16.mxu0 0
    %554 = vmatmul.mubr.bf16.gmra.mrb[0].mxu0 %v239
    %v555 = vpop.f32.mrb[0].mxu0
    %v556 = vadd.f32 %v73, %v555
    %v557 = vpop.f32.mrb[0].mxu0
    %v558 = vadd.f32 %v77, %v557
    %v559 = vpop.f32.mrb[0].mxu0
    %v560 = vadd.f32 %v73, %v559
    %v561 = vpop.f32.mrb[0].mxu0
    %v562 = vadd.f32 %v77, %v561
    %563 = vmatprep.mubr.bf16.mxu0 0
    %564 = vmatmul.mubr.bf16.gmra.mrb[0].mxu0 %v242
    %v565 = vpop.f32.mrb[0].mxu0
    %v566 = vadd.f32 %v73, %v565
    %v567 = vpop.f32.mrb[0].mxu0
    %v568 = vadd.f32 %v77, %v567
    %v569 = vpop.f32.mrb[0].mxu0
    %v570 = vadd.f32 %v73, %v569
    %v571 = vpop.f32.mrb[0].mxu0
    %v572 = vadd.f32 %v77, %v571
    %573 = vmatprep.mubr.bf16.mxu0 0
    %574 = vmatmul.mubr.bf16.gmra.mrb[0].mxu0 %v245
    %v575 = vpop.f32.mrb[0].mxu0
    %v576 = vadd.f32 %v73, %v575
    %v577 = vpop.f32.mrb[0].mxu0
    %v578 = vadd.f32 %v77, %v577
    %v579 = vpop.f32.mrb[0].mxu0
    %v580 = vadd.f32 %v73, %v579
    %v581 = vpop.f32.mrb[0].mxu0
    %v582 = vadd.f32 %v77, %v581
    %583 = vmatprep.mubr.bf16.mxu0 0
    %584 = vmatmul.mubr.bf16.gmra.mrb[0].mxu0 %v248
    %v585 = vpop.f32.mrb[0].mxu0
    %v586 = vadd.f32 %v73, %v585
    %v587 = vpop.f32.mrb[0].mxu0
    %v588 = vadd.f32 %v77, %v587
    %v589 = vpop.f32.mrb[0].mxu0
    %v590 = vadd.f32 %v73, %v589
    %v591 = vpop.f32.mrb[0].mxu0
    %v592 = vadd.f32 %v77, %v591
    %593 = vmatprep.mubr.bf16.mxu0 0
    %594 = vmatmul.mubr.bf16.gmra.mrb[0].mxu0 %v251
    %v595 = vpop.f32.mrb[0].mxu0
    %v596 = vadd.f32 %v73, %v595
    %v597 = vpop.f32.mrb[0].mxu0
    %v598 = vadd.f32 %v77, %v597
    %v599 = vpop.f32.mrb[0].mxu0
    %v600 = vadd.f32 %v73, %v599
    %v601 = vpop.f32.mrb[0].mxu0
    %v602 = vadd.f32 %v77, %v601
    %603 = vmatprep.mubr.bf16.mxu0 0
    %604 = vmatmul.mubr.bf16.gmra.mrb[0].mxu0 %v254
    %v605 = vpop.f32.mrb[0].mxu0
    %v606 = vadd.f32 %v73, %v605
    %v607 = vpop.f32.mrb[0].mxu0
    %v608 = vadd.f32 %v77, %v607
    %v609 = vpop.f32.mrb[0].mxu0
    %v610 = vadd.f32 %v73, %v609
    %v611 = vpop.f32.mrb[0].mxu0
    %v612 = vadd.f32 %v77, %v611
    %613 = vmatprep.mubr.bf16.mxu0 0
    %614 = vmatmul.mubr.bf16.gmra.mrb[0].mxu0 %v257
    %v615 = vpop.f32.mrb[0].mxu0
    %v616 = vadd.f32 %v73, %v615
    %v617 = vpop.f32.mrb[0].mxu0
    %v618 = vadd.f32 %v77, %v617
    %v619 = vpop.f32.mrb[0].mxu0
    %v620 = vadd.f32 %v73, %v619
    %v621 = vpop.f32.mrb[0].mxu0
    %v622 = vadd.f32 %v77, %v621
    %623 = vmatprep.mubr.bf16.mxu0 0
    %624 = vmatmul.mubr.bf16.gmra.mrb[0].mxu0 %v260
    %v625 = vpop.f32.mrb[0].mxu0
    %v626 = vadd.f32 %v73, %v625
    %v627 = vpop.f32.mrb[0].mxu0
    %v628 = vadd.f32 %v77, %v627
    %v629 = vpop.f32.mrb[0].mxu0
    %v630 = vadd.f32 %v73, %v629
    %v631 = vpop.f32.mrb[0].mxu0
    %v632 = vadd.f32 %v77, %v631
    %633 = vmatprep.mubr.bf16.mxu0 0
    %634 = vmatmul.mubr.bf16.gmra.mrb[0].mxu0 %v263
    %v635 = vpop.f32.mrb[0].mxu0
    %v636 = vadd.f32 %v73, %v635
    %v637 = vpop.f32.mrb[0].mxu0
    %v638 = vadd.f32 %v77, %v637
    %v639 = vpop.f32.mrb[0].mxu0
    %v640 = vadd.f32 %v73, %v639
    %v641 = vpop.f32.mrb[0].mxu0
    %v642 = vadd.f32 %v77, %v641
    %643 = vmatprep.mubr.bf16.mxu0 0
    %644 = vmatmul.mubr.bf16.gmra.mrb[0].mxu0 %v266
    %v645 = vpop.f32.mrb[0].mxu0
    %v646 = vadd.f32 %v73, %v645
    %v647 = vpop.f32.mrb[0].mxu0
    %v648 = vadd.f32 %v77, %v647
    %v649 = vpop.f32.mrb[0].mxu0
    %v650 = vadd.f32 %v73, %v649
    %v651 = vpop.f32.mrb[0].mxu0
    %v652 = vadd.f32 %v77, %v651
    %653 = vdwg.mxu0
    %654 = vmatprep.subr.bf16.mxu0 0
    %655 = vmatpush1.bf16.msra.mxu0 %v203
    %656 = vmatprep.subr.bf16.mxu0 0
    %657 = vmatpush1.bf16.msra.mxu0 %v208
    %658 = vmatprep.subr.bf16.mxu0 0
    %659 = vmatpush1.bf16.msra.mxu0 0
    %660 = vmatprep.subr.bf16.mxu0 0
    %661 = vmatpush1.bf16.msra.mxu0 0
    %662 = vmatprep.subr.bf16.mxu0 0
    %663 = vmatpush1.bf16.msra.mxu0 0
    %664 = vmatprep.subr.bf16.mxu0 0
    %665 = vmatpush1.bf16.msra.mxu0 0
    %666 = vmatprep.subr.bf16.mxu0 0
    %667 = vmatpush1.bf16.msra.mxu0 0
    %668 = vmatprep.subr.bf16.mxu0 0
    %669 = vmatpush1.bf16.msra.mxu0 0
    %670 = vmatprep.subr.bf16.mxu0 0
    %671 = vmatpush1.bf16.msra.mxu0 0
    %672 = vmatprep.subr.bf16.mxu0 0
    %673 = vmatpush1.bf16.msra.mxu0 0
    %674 = vmatprep.subr.bf16.mxu0 0
    %675 = vmatpush1.bf16.msra.mxu0 0
    %676 = vmatprep.subr.bf16.mxu0 0
    %677 = vmatpush1.bf16.msra.mxu0 0
    %678 = vmatprep.subr.bf16.mxu0 0
    %679 = vmatpush1.bf16.msra.mxu0 0
    %680 = vmatprep.subr.bf16.mxu0 0
    %681 = vmatpush1.bf16.msra.mxu0 0
    %682 = vmatprep.subr.bf16.mxu0 0
    %683 = vmatpush1.bf16.msra.mxu0 0
    %684 = vmatprep.subr.bf16.mxu0 0
    %685 = vmatpush1.bf16.msra.mxu0 0
    %686 = vmatprep.mubr.bf16.mxu0 0
    %687 = vmatmul.mubr.bf16.gmra.mrb[0].mxu0 %v221
    %v688 = vpop.f32.mrb[0].mxu0
    %v689 = vadd.f32 %v81, %v688
    %v690 = vpop.f32.mrb[0].mxu0
    %v691 = vpop.f32.mrb[0].mxu0
    %v692 = vadd.f32 %v81, %v691
    %v693 = vpop.f32.mrb[0].mxu0
    %694 = vmatprep.mubr.bf16.mxu0 0
    %695 = vmatmul.mubr.bf16.gmra.mrb[0].mxu0 %v224
    %v696 = vpop.f32.mrb[0].mxu0
    %v697 = vadd.f32 %v81, %v696
    %v698 = vpop.f32.mrb[0].mxu0
    %v699 = vpop.f32.mrb[0].mxu0
    %v700 = vadd.f32 %v81, %v699
    %v701 = vpop.f32.mrb[0].mxu0
    %702 = vmatprep.mubr.bf16.mxu0 0
    %703 = vmatmul.mubr.bf16.gmra.mrb[0].mxu0 %v227
    %v704 = vpop.f32.mrb[0].mxu0
    %v705 = vadd.f32 %v81, %v704
    %v706 = vpop.f32.mrb[0].mxu0
    %v707 = vpop.f32.mrb[0].mxu0
    %v708 = vadd.f32 %v81, %v707
    %v709 = vpop.f32.mrb[0].mxu0
    %710 = vmatprep.mubr.bf16.mxu0 0
    %711 = vmatmul.mubr.bf16.gmra.mrb[0].mxu0 %v230
    %v712 = vpop.f32.mrb[0].mxu0
    %v713 = vadd.f32 %v81, %v712
    %v714 = vpop.f32.mrb[0].mxu0
    %v715 = vpop.f32.mrb[0].mxu0
    %v716 = vadd.f32 %v81, %v715
    %v717 = vpop.f32.mrb[0].mxu0
    %718 = vmatprep.mubr.bf16.mxu0 0
    %719 = vmatmul.mubr.bf16.gmra.mrb[0].mxu0 %v233
    %v720 = vpop.f32.mrb[0].mxu0
    %v721 = vadd.f32 %v81, %v720
    %v722 = vpop.f32.mrb[0].mxu0
    %v723 = vpop.f32.mrb[0].mxu0
    %v724 = vadd.f32 %v81, %v723
    %v725 = vpop.f32.mrb[0].mxu0
    %726 = vmatprep.mubr.bf16.mxu0 0
    %727 = vmatmul.mubr.bf16.gmra.mrb[0].mxu0 %v236
    %v728 = vpop.f32.mrb[0].mxu0
    %v729 = vadd.f32 %v81, %v728
    %v730 = vpop.f32.mrb[0].mxu0
    %v731 = vpop.f32.mrb[0].mxu0
    %v732 = vadd.f32 %v81, %v731
    %v733 = vpop.f32.mrb[0].mxu0
    %734 = vmatprep.mubr.bf16.mxu0 0
    %735 = vmatmul.mubr.bf16.gmra.mrb[0].mxu0 %v239
    %v736 = vpop.f32.mrb[0].mxu0
    %v737 = vadd.f32 %v81, %v736
    %v738 = vpop.f32.mrb[0].mxu0
    %v739 = vpop.f32.mrb[0].mxu0
    %v740 = vadd.f32 %v81, %v739
    %v741 = vpop.f32.mrb[0].mxu0
    %742 = vmatprep.mubr.bf16.mxu0 0
    %743 = vmatmul.mubr.bf16.gmra.mrb[0].mxu0 %v242
    %v744 = vpop.f32.mrb[0].mxu0
    %v745 = vadd.f32 %v81, %v744
    %v746 = vpop.f32.mrb[0].mxu0
    %v747 = vpop.f32.mrb[0].mxu0
    %v748 = vadd.f32 %v81, %v747
    %v749 = vpop.f32.mrb[0].mxu0
    %750 = vmatprep.mubr.bf16.mxu0 0
    %751 = vmatmul.mubr.bf16.gmra.mrb[0].mxu0 %v245
    %v752 = vpop.f32.mrb[0].mxu0
    %v753 = vadd.f32 %v81, %v752
    %v754 = vpop.f32.mrb[0].mxu0
    %v755 = vpop.f32.mrb[0].mxu0
    %v756 = vadd.f32 %v81, %v755
    %v757 = vpop.f32.mrb[0].mxu0
    %758 = vmatprep.mubr.bf16.mxu0 0
    %759 = vmatmul.mubr.bf16.gmra.mrb[0].mxu0 %v248
    %v760 = vpop.f32.mrb[0].mxu0
    %v761 = vadd.f32 %v81, %v760
    %v762 = vpop.f32.mrb[0].mxu0
    %v763 = vpop.f32.mrb[0].mxu0
    %v764 = vadd.f32 %v81, %v763
    %v765 = vpop.f32.mrb[0].mxu0
    %766 = vmatprep.mubr.bf16.mxu0 0
    %767 = vmatmul.mubr.bf16.gmra.mrb[0].mxu0 %v251
    %v768 = vpop.f32.mrb[0].mxu0
    %v769 = vadd.f32 %v81, %v768
    %v770 = vpop.f32.mrb[0].mxu0
    %v771 = vpop.f32.mrb[0].mxu0
    %v772 = vadd.f32 %v81, %v771
    %v773 = vpop.f32.mrb[0].mxu0
    %774 = vmatprep.mubr.bf16.mxu0 0
    %775 = vmatmul.mubr.bf16.gmra.mrb[0].mxu0 %v254
    %v776 = vpop.f32.mrb[0].mxu0
    %v777 = vadd.f32 %v81, %v776
    %v778 = vpop.f32.mrb[0].mxu0
    %v779 = vpop.f32.mrb[0].mxu0
    %v780 = vadd.f32 %v81, %v779
    %v781 = vpop.f32.mrb[0].mxu0
    %782 = vmatprep.mubr.bf16.mxu0 0
    %783 = vmatmul.mubr.bf16.gmra.mrb[0].mxu0 %v257
    %v784 = vpop.f32.mrb[0].mxu0
    %v785 = vadd.f32 %v81, %v784
    %v786 = vpop.f32.mrb[0].mxu0
    %v787 = vpop.f32.mrb[0].mxu0
    %v788 = vadd.f32 %v81, %v787
    %v789 = vpop.f32.mrb[0].mxu0
    %790 = vmatprep.mubr.bf16.mxu0 0
    %791 = vmatmul.mubr.bf16.gmra.mrb[0].mxu0 %v260
    %v792 = vpop.f32.mrb[0].mxu0
    %v793 = vadd.f32 %v81, %v792
    %v794 = vpop.f32.mrb[0].mxu0
    %v795 = vpop.f32.mrb[0].mxu0
    %v796 = vadd.f32 %v81, %v795
    %v797 = vpop.f32.mrb[0].mxu0
    %798 = vmatprep.mubr.bf16.mxu0 0
    %799 = vmatmul.mubr.bf16.gmra.mrb[0].mxu0 %v263
    %v800 = vpop.f32.mrb[0].mxu0
    %v801 = vadd.f32 %v81, %v800
    %v802 = vpop.f32.mrb[0].mxu0
    %v803 = vpop.f32.mrb[0].mxu0
    %v804 = vadd.f32 %v81, %v803
    %v805 = vpop.f32.mrb[0].mxu0
    %806 = vmatprep.mubr.bf16.mxu0 0
    %807 = vmatmul.mubr.bf16.gmra.mrb[0].mxu0 %v266
    %v808 = vpop.f32.mrb[0].mxu0
    %v809 = vadd.f32 %v81, %v808
    %v810 = vpop.f32.mrb[0].mxu0
    %v811 = vpop.f32.mrb[0].mxu0
    %v812 = vadd.f32 %v81, %v811
    %v813 = vpop.f32.mrb[0].mxu0
    %814 = vdwg.mxu0
    %v815 = vpack.c.bf16 %v307, %v303
    %v816 = vpack.c.bf16 %v309, %v305
    %v817 = vpack.c.bf16 %v500, %v496
    %v818 = vpack.c.bf16 %v502, %v498
    %v819 = vpack.c.bf16 %v692, %v689
    %v820 = vpack.c.bf16 %v317, %v313
    %v821 = vpack.c.bf16 %v319, %v315
    %v822 = vpack.c.bf16 %v510, %v506
    %v823 = vpack.c.bf16 %v512, %v508
    %v824 = vpack.c.bf16 %v700, %v697
    %v825 = vpack.c.bf16 %v327, %v323
    %v826 = vpack.c.bf16 %v329, %v325
    %v827 = vpack.c.bf16 %v520, %v516
    %v828 = vpack.c.bf16 %v522, %v518
    %v829 = vpack.c.bf16 %v708, %v705
    %v830 = vpack.c.bf16 %v337, %v333
    %v831 = vpack.c.bf16 %v339, %v335
    %v832 = vpack.c.bf16 %v530, %v526
    %v833 = vpack.c.bf16 %v532, %v528
    %v834 = vpack.c.bf16 %v716, %v713
    %v835 = vpack.c.bf16 %v347, %v343
    %v836 = vpack.c.bf16 %v349, %v345
    %v837 = vpack.c.bf16 %v540, %v536
    %v838 = vpack.c.bf16 %v542, %v538
    %v839 = vpack.c.bf16 %v724, %v721
    %v840 = vpack.c.bf16 %v357, %v353
    %v841 = vpack.c.bf16 %v359, %v355
    %v842 = vpack.c.bf16 %v550, %v546
    %v843 = vpack.c.bf16 %v552, %v548
    %v844 = vpack.c.bf16 %v732, %v729
    %v845 = vpack.c.bf16 %v367, %v363
    %v846 = vpack.c.bf16 %v369, %v365
    %v847 = vpack.c.bf16 %v560, %v556
    %v848 = vpack.c.bf16 %v562, %v558
    %v849 = vpack.c.bf16 %v740, %v737
    %v850 = vpack.c.bf16 %v377, %v373
    %v851 = vpack.c.bf16 %v379, %v375
    %v852 = vpack.c.bf16 %v570, %v566
    %v853 = vpack.c.bf16 %v572, %v568
    %v854 = vpack.c.bf16 %v748, %v745
    %v855 = vpack.c.bf16 %v387, %v383
    %v856 = vpack.c.bf16 %v389, %v385
    %v857 = vpack.c.bf16 %v580, %v576
    %v858 = vpack.c.bf16 %v582, %v578
    %v859 = vpack.c.bf16 %v756, %v753
    %v860 = vpack.c.bf16 %v397, %v393
    %v861 = vpack.c.bf16 %v399, %v395
    %v862 = vpack.c.bf16 %v590, %v586
    %v863 = vpack.c.bf16 %v592, %v588
    %v864 = vpack.c.bf16 %v764, %v761
    %v865 = vpack.c.bf16 %v407, %v403
    %v866 = vpack.c.bf16 %v409, %v405
    %v867 = vpack.c.bf16 %v600, %v596
    %v868 = vpack.c.bf16 %v602, %v598
    %v869 = vpack.c.bf16 %v772, %v769
    %v870 = vpack.c.bf16 %v417, %v413
    %v871 = vpack.c.bf16 %v419, %v415
    %v872 = vpack.c.bf16 %v610, %v606
    %v873 = vpack.c.bf16 %v612, %v608
    %v874 = vpack.c.bf16 %v780, %v777
    %v875 = vpack.c.bf16 %v427, %v423
    %v876 = vpack.c.bf16 %v429, %v425
    %v877 = vpack.c.bf16 %v620, %v616
    %v878 = vpack.c.bf16 %v622, %v618
    %v879 = vpack.c.bf16 %v788, %v785
    %v880 = vpack.c.bf16 %v437, %v433
    %v881 = vpack.c.bf16 %v439, %v435
    %v882 = vpack.c.bf16 %v630, %v626
    %v883 = vpack.c.bf16 %v632, %v628
    %v884 = vpack.c.bf16 %v796, %v793
    %v885 = vpack.c.bf16 %v447, %v443
    %v886 = vpack.c.bf16 %v449, %v445
    %v887 = vpack.c.bf16 %v640, %v636
    %v888 = vpack.c.bf16 %v642, %v638
    %v889 = vpack.c.bf16 %v804, %v801
    %v890 = vpack.c.bf16 %v457, %v453
    %v891 = vpack.c.bf16 %v459, %v455
    %v892 = vpack.c.bf16 %v650, %v646
    %v893 = vpack.c.bf16 %v652, %v648
    %v894 = vpack.c.bf16 %v812, %v809
    %v975 = vunpack.c.l.b16 %v815
    %v976 = vunpack.c.l.b16 %v816
    %v977 = vunpack.c.l.b16 %v817
    %v978 = vunpack.c.l.b16 %v818
    %v979 = vunpack.c.l.b16 %v819
    %v980 = vunpack.c.h.b16 %v815
    %v981 = vunpack.c.h.b16 %v816
    %v982 = vunpack.c.h.b16 %v817
    %v983 = vunpack.c.h.b16 %v818
    %v984 = vunpack.c.h.b16 %v819
    %v985 = vunpack.c.l.b16 %v820
    %v986 = vunpack.c.l.b16 %v821
    %v987 = vunpack.c.l.b16 %v822
    %v988 = vunpack.c.l.b16 %v823
    %v989 = vunpack.c.l.b16 %v824
    %v990 = vunpack.c.h.b16 %v820
    %v991 = vunpack.c.h.b16 %v821
    %v992 = vunpack.c.h.b16 %v822
    %v993 = vunpack.c.h.b16 %v823
    %v994 = vunpack.c.h.b16 %v824
    %v995 = vunpack.c.l.b16 %v825
    %v996 = vunpack.c.l.b16 %v826
    %v997 = vunpack.c.l.b16 %v827
    %v998 = vunpack.c.l.b16 %v828
    %v999 = vunpack.c.l.b16 %v829
    %v1000 = vunpack.c.h.b16 %v825
    %v1001 = vunpack.c.h.b16 %v826
    %v1002 = vunpack.c.h.b16 %v827
    %v1003 = vunpack.c.h.b16 %v828
    %v1004 = vunpack.c.h.b16 %v829
    %v1005 = vunpack.c.l.b16 %v830
    %v1006 = vunpack.c.l.b16 %v831
    %v1007 = vunpack.c.l.b16 %v832
    %v1008 = vunpack.c.l.b16 %v833
    %v1009 = vunpack.c.l.b16 %v834
    %v1010 = vunpack.c.h.b16 %v830
    %v1011 = vunpack.c.h.b16 %v831
    %v1012 = vunpack.c.h.b16 %v832
    %v1013 = vunpack.c.h.b16 %v833
    %v1014 = vunpack.c.h.b16 %v834
    %v1015 = vunpack.c.l.b16 %v835
    %v1016 = vunpack.c.l.b16 %v836
    %v1017 = vunpack.c.l.b16 %v837
    %v1018 = vunpack.c.l.b16 %v838
    %v1019 = vunpack.c.l.b16 %v839
    %v1020 = vunpack.c.h.b16 %v835
    %v1021 = vunpack.c.h.b16 %v836
    %v1022 = vunpack.c.h.b16 %v837
    %v1023 = vunpack.c.h.b16 %v838
    %v1024 = vunpack.c.h.b16 %v839
    %v1025 = vunpack.c.l.b16 %v840
    %v1026 = vunpack.c.l.b16 %v841
    %v1027 = vunpack.c.l.b16 %v842
    %v1028 = vunpack.c.l.b16 %v843
    %v1029 = vunpack.c.l.b16 %v844
    %v1030 = vunpack.c.h.b16 %v840
    %v1031 = vunpack.c.h.b16 %v841
    %v1032 = vunpack.c.h.b16 %v842
    %v1033 = vunpack.c.h.b16 %v843
    %v1034 = vunpack.c.h.b16 %v844
    %v1035 = vunpack.c.l.b16 %v845
    %v1036 = vunpack.c.l.b16 %v846
    %v1037 = vunpack.c.l.b16 %v847
    %v1038 = vunpack.c.l.b16 %v848
    %v1039 = vunpack.c.l.b16 %v849
    %v1040 = vunpack.c.h.b16 %v845
    %v1041 = vunpack.c.h.b16 %v846
    %v1042 = vunpack.c.h.b16 %v847
    %v1043 = vunpack.c.h.b16 %v848
    %v1044 = vunpack.c.h.b16 %v849
    %v1045 = vunpack.c.l.b16 %v850
    %v1046 = vunpack.c.l.b16 %v851
    %v1047 = vunpack.c.l.b16 %v852
    %v1048 = vunpack.c.l.b16 %v853
    %v1049 = vunpack.c.l.b16 %v854
    %v1050 = vunpack.c.h.b16 %v850
    %v1051 = vunpack.c.h.b16 %v851
    %v1052 = vunpack.c.h.b16 %v852
    %v1053 = vunpack.c.h.b16 %v853
    %v1054 = vunpack.c.h.b16 %v854
    %v1055 = vunpack.c.l.b16 %v855
    %v1056 = vunpack.c.l.b16 %v856
    %v1057 = vunpack.c.l.b16 %v857
    %v1058 = vunpack.c.l.b16 %v858
    %v1059 = vunpack.c.l.b16 %v859
    %v1060 = vunpack.c.h.b16 %v855
    %v1061 = vunpack.c.h.b16 %v856
    %v1062 = vunpack.c.h.b16 %v857
    %v1063 = vunpack.c.h.b16 %v858
    %v1064 = vunpack.c.h.b16 %v859
    %v1065 = vunpack.c.l.b16 %v860
    %v1066 = vunpack.c.l.b16 %v861
    %v1067 = vunpack.c.l.b16 %v862
    %v1068 = vunpack.c.l.b16 %v863
    %v1069 = vunpack.c.l.b16 %v864
    %v1070 = vunpack.c.h.b16 %v860
    %v1071 = vunpack.c.h.b16 %v861
    %v1072 = vunpack.c.h.b16 %v862
    %v1073 = vunpack.c.h.b16 %v863
    %v1074 = vunpack.c.h.b16 %v864
    %v1075 = vunpack.c.l.b16 %v865
    %v1076 = vunpack.c.l.b16 %v866
    %v1077 = vunpack.c.l.b16 %v867
    %v1078 = vunpack.c.l.b16 %v868
    %v1079 = vunpack.c.l.b16 %v869
    %v1080 = vunpack.c.h.b16 %v865
    %v1081 = vunpack.c.h.b16 %v866
    %v1082 = vunpack.c.h.b16 %v867
    %v1083 = vunpack.c.h.b16 %v868
    %v1084 = vunpack.c.h.b16 %v869
    %v1085 = vunpack.c.l.b16 %v870
    %v1086 = vunpack.c.l.b16 %v871
    %v1087 = vunpack.c.l.b16 %v872
    %v1088 = vunpack.c.l.b16 %v873
    %v1089 = vunpack.c.l.b16 %v874
    %v1090 = vunpack.c.h.b16 %v870
    %v1091 = vunpack.c.h.b16 %v871
    %v1092 = vunpack.c.h.b16 %v872
    %v1093 = vunpack.c.h.b16 %v873
    %v1094 = vunpack.c.h.b16 %v874
    %v1095 = vunpack.c.l.b16 %v875
    %v1096 = vunpack.c.l.b16 %v876
    %v1097 = vunpack.c.l.b16 %v877
    %v1098 = vunpack.c.l.b16 %v878
    %v1099 = vunpack.c.l.b16 %v879
    %v1100 = vunpack.c.h.b16 %v875
    %v1101 = vunpack.c.h.b16 %v876
    %v1102 = vunpack.c.h.b16 %v877
    %v1103 = vunpack.c.h.b16 %v878
    %v1104 = vunpack.c.h.b16 %v879
    %v1105 = vunpack.c.l.b16 %v880
    %v1106 = vunpack.c.l.b16 %v881
    %v1107 = vunpack.c.l.b16 %v882
    %v1108 = vunpack.c.l.b16 %v883
    %v1109 = vunpack.c.l.b16 %v884
    %v1110 = vunpack.c.h.b16 %v880
    %v1111 = vunpack.c.h.b16 %v881
    %v1112 = vunpack.c.h.b16 %v882
    %v1113 = vunpack.c.h.b16 %v883
    %v1114 = vunpack.c.h.b16 %v884
    %v1115 = vunpack.c.l.b16 %v885
    %v1116 = vunpack.c.l.b16 %v886
    %v1117 = vunpack.c.l.b16 %v887
    %v1118 = vunpack.c.l.b16 %v888
    %v1119 = vunpack.c.l.b16 %v889
    %v1120 = vunpack.c.h.b16 %v885
    %v1121 = vunpack.c.h.b16 %v886
    %v1122 = vunpack.c.h.b16 %v887
    %v1123 = vunpack.c.h.b16 %v888
    %v1124 = vunpack.c.h.b16 %v889
    %v1125 = vunpack.c.l.b16 %v890
    %v1126 = vunpack.c.l.b16 %v891
    %v1127 = vunpack.c.l.b16 %v892
    %v1128 = vunpack.c.l.b16 %v893
    %v1129 = vunpack.c.l.b16 %v894
    %v1130 = vunpack.c.h.b16 %v890
    %v1131 = vunpack.c.h.b16 %v891
    %v1132 = vunpack.c.h.b16 %v892
    %v1133 = vunpack.c.h.b16 %v893
    %v1134 = vunpack.c.h.b16 %v894
    %v1135 = vpack.c.b16 %v976, %v975
    %v1136 = vpack.c.b16 %v978, %v977
    %v1137 = vpack.c.b16 %v979, %v979
    %v1138 = vpack.c.b16 %v981, %v980
    %v1139 = vpack.c.b16 %v983, %v982
    %v1140 = vpack.c.b16 %v984, %v984
    %v1141 = vpack.c.b16 %v986, %v985
    %v1142 = vpack.c.b16 %v988, %v987
    %v1143 = vpack.c.b16 %v989, %v989
    %v1144 = vpack.c.b16 %v991, %v990
    %v1145 = vpack.c.b16 %v993, %v992
    %v1146 = vpack.c.b16 %v994, %v994
    %v1147 = vpack.c.b16 %v996, %v995
    %v1148 = vpack.c.b16 %v998, %v997
    %v1149 = vpack.c.b16 %v999, %v999
    %v1150 = vpack.c.b16 %v1001, %v1000
    %v1151 = vpack.c.b16 %v1003, %v1002
    %v1152 = vpack.c.b16 %v1004, %v1004
    %v1153 = vpack.c.b16 %v1006, %v1005
    %v1154 = vpack.c.b16 %v1008, %v1007
    %v1155 = vpack.c.b16 %v1009, %v1009
    %v1156 = vpack.c.b16 %v1011, %v1010
    %v1157 = vpack.c.b16 %v1013, %v1012
    %v1158 = vpack.c.b16 %v1014, %v1014
    %v1159 = vpack.c.b16 %v1016, %v1015
    %v1160 = vpack.c.b16 %v1018, %v1017
    %v1161 = vpack.c.b16 %v1019, %v1019
    %v1162 = vpack.c.b16 %v1021, %v1020
    %v1163 = vpack.c.b16 %v1023, %v1022
    %v1164 = vpack.c.b16 %v1024, %v1024
    %v1165 = vpack.c.b16 %v1026, %v1025
    %v1166 = vpack.c.b16 %v1028, %v1027
    %v1167 = vpack.c.b16 %v1029, %v1029
    %v1168 = vpack.c.b16 %v1031, %v1030
    %v1169 = vpack.c.b16 %v1033, %v1032
    %v1170 = vpack.c.b16 %v1034, %v1034
    %v1171 = vpack.c.b16 %v1036, %v1035
    %v1172 = vpack.c.b16 %v1038, %v1037
    %v1173 = vpack.c.b16 %v1039, %v1039
    %v1174 = vpack.c.b16 %v1041, %v1040
    %v1175 = vpack.c.b16 %v1043, %v1042
    %v1176 = vpack.c.b16 %v1044, %v1044
    %v1177 = vpack.c.b16 %v1046, %v1045
    %v1178 = vpack.c.b16 %v1048, %v1047
    %v1179 = vpack.c.b16 %v1049, %v1049
    %v1180 = vpack.c.b16 %v1051, %v1050
    %v1181 = vpack.c.b16 %v1053, %v1052
    %v1182 = vpack.c.b16 %v1054, %v1054
    %v1183 = vpack.c.b16 %v1056, %v1055
    %v1184 = vpack.c.b16 %v1058, %v1057
    %v1185 = vpack.c.b16 %v1059, %v1059
    %v1186 = vpack.c.b16 %v1061, %v1060
    %v1187 = vpack.c.b16 %v1063, %v1062
    %v1188 = vpack.c.b16 %v1064, %v1064
    %v1189 = vpack.c.b16 %v1066, %v1065
    %v1190 = vpack.c.b16 %v1068, %v1067
    %v1191 = vpack.c.b16 %v1069, %v1069
    %v1192 = vpack.c.b16 %v1071, %v1070
    %v1193 = vpack.c.b16 %v1073, %v1072
    %v1194 = vpack.c.b16 %v1074, %v1074
    %v1195 = vpack.c.b16 %v1076, %v1075
    %v1196 = vpack.c.b16 %v1078, %v1077
    %v1197 = vpack.c.b16 %v1079, %v1079
    %v1198 = vpack.c.b16 %v1081, %v1080
    %v1199 = vpack.c.b16 %v1083, %v1082
    %v1200 = vpack.c.b16 %v1084, %v1084
    %v1201 = vpack.c.b16 %v1086, %v1085
    %v1202 = vpack.c.b16 %v1088, %v1087
    %v1203 = vpack.c.b16 %v1089, %v1089
    %v1204 = vpack.c.b16 %v1091, %v1090
    %v1205 = vpack.c.b16 %v1093, %v1092
    %v1206 = vpack.c.b16 %v1094, %v1094
    %v1207 = vpack.c.b16 %v1096, %v1095
    %v1208 = vpack.c.b16 %v1098, %v1097
    %v1209 = vpack.c.b16 %v1099, %v1099
    %v1210 = vpack.c.b16 %v1101, %v1100
    %v1211 = vpack.c.b16 %v1103, %v1102
    %v1212 = vpack.c.b16 %v1104, %v1104
    %v1213 = vpack.c.b16 %v1106, %v1105
    %v1214 = vpack.c.b16 %v1108, %v1107
    %v1215 = vpack.c.b16 %v1109, %v1109
    %v1216 = vpack.c.b16 %v1111, %v1110
    %v1217 = vpack.c.b16 %v1113, %v1112
    %v1218 = vpack.c.b16 %v1114, %v1114
    %v1219 = vpack.c.b16 %v1116, %v1115
    %v1220 = vpack.c.b16 %v1118, %v1117
    %v1221 = vpack.c.b16 %v1119, %v1119
    %v1222 = vpack.c.b16 %v1121, %v1120
    %v1223 = vpack.c.b16 %v1123, %v1122
    %v1224 = vpack.c.b16 %v1124, %v1124
    %v1225 = vpack.c.b16 %v1126, %v1125
    %v1226 = vpack.c.b16 %v1128, %v1127
    %v1227 = vpack.c.b16 %v1129, %v1129
    %v1228 = vpack.c.b16 %v1131, %v1130
    %v1229 = vpack.c.b16 %v1133, %v1132
    %v1230 = vpack.c.b16 %v1134, %v1134
    %1327 = vst [vmem:[#allocation2] sm:$0xff] %v1135
    %1328 = vst [vmem:[#allocation2 + $0x8] sm:$0xff] %v1136
    %1329 = vst [vmem:[#allocation2 + $0x10] sm:$0xf] %v1137
    %1330 = vst [vmem:[#allocation2 + $0x14] sm:$0xff] %v1138
    %1331 = vst [vmem:[#allocation2 + $0x1c] sm:$0xff] %v1139
    %1332 = vst [vmem:[#allocation2 + $0x24] sm:$0xf] %v1140
    %1333 = vst [vmem:[#allocation2 + $0x28] sm:$0xff] %v1141
    %1334 = vst [vmem:[#allocation2 + $0x30] sm:$0xff] %v1142
    %1335 = vst [vmem:[#allocation2 + $0x38] sm:$0xf] %v1143
    %1336 = vst [vmem:[#allocation2 + $0x3c] sm:$0xff] %v1144
    %1337 = vst [vmem:[#allocation2 + $0x44] sm:$0xff] %v1145
    %1338 = vst [vmem:[#allocation2 + $0x4c] sm:$0xf] %v1146
    %1339 = vst [vmem:[#allocation2 + $0x50] sm:$0xff] %v1147
    %1340 = vst [vmem:[#allocation2 + $0x58] sm:$0xff] %v1148
    %1341 = vst [vmem:[#allocation2 + $0x60] sm:$0xf] %v1149
    %1342 = vst [vmem:[#allocation2 + $0x64] sm:$0xff] %v1150
    %1343 = vst [vmem:[#allocation2 + $0x6c] sm:$0xff] %v1151
    %1344 = vst [vmem:[#allocation2 + $0x74] sm:$0xf] %v1152
    %1345 = vst [vmem:[#allocation2 + $0x78] sm:$0xff] %v1153
    %1346 = vst [vmem:[#allocation2 + $0x80] sm:$0xff] %v1154
    %1347 = vst [vmem:[#allocation2 + $0x88] sm:$0xf] %v1155
    %1348 = vst [vmem:[#allocation2 + $0x8c] sm:$0xff] %v1156
    %1349 = vst [vmem:[#allocation2 + $0x94] sm:$0xff] %v1157
    %1350 = vst [vmem:[#allocation2 + $0x9c] sm:$0xf] %v1158
    %1351 = vst [vmem:[#allocation2 + $0xa0] sm:$0xff] %v1159
    %1352 = vst [vmem:[#allocation2 + $0xa8] sm:$0xff] %v1160
    %1353 = vst [vmem:[#allocation2 + $0xb0] sm:$0xf] %v1161
    %1354 = vst [vmem:[#allocation2 + $0xb4] sm:$0xff] %v1162
    %1355 = vst [vmem:[#allocation2 + $0xbc] sm:$0xff] %v1163
    %1356 = vst [vmem:[#allocation2 + $0xc4] sm:$0xf] %v1164
    %1357 = vst [vmem:[#allocation2 + $0xc8] sm:$0xff] %v1165
    %1358 = vst [vmem:[#allocation2 + $0xd0] sm:$0xff] %v1166
    %1359 = vst [vmem:[#allocation2 + $0xd8] sm:$0xf] %v1167
    %1360 = vst [vmem:[#allocation2 + $0xdc] sm:$0xff] %v1168
    %1361 = vst [vmem:[#allocation2 + $0xe4] sm:$0xff] %v1169
    %1362 = vst [vmem:[#allocation2 + $0xec] sm:$0xf] %v1170
    %1363 = vst [vmem:[#allocation2 + $0xf0] sm:$0xff] %v1171
    %1364 = vst [vmem:[#allocation2 + $0xf8] sm:$0xff] %v1172
    %1365 = vst [vmem:[#allocation2 + $0x100] sm:$0xf] %v1173
    %1366 = vst [vmem:[#allocation2 + $0x104] sm:$0xff] %v1174
    %1367 = vst [vmem:[#allocation2 + $0x10c] sm:$0xff] %v1175
    %1368 = vst [vmem:[#allocation2 + $0x114] sm:$0xf] %v1176
    %1369 = vst [vmem:[#allocation2 + $0x118] sm:$0xff] %v1177
    %1370 = vst [vmem:[#allocation2 + $0x120] sm:$0xff] %v1178
    %1371 = vst [vmem:[#allocation2 + $0x128] sm:$0xf] %v1179
    %1372 = vst [vmem:[#allocation2 + $0x12c] sm:$0xff] %v1180
    %1373 = vst [vmem:[#allocation2 + $0x134] sm:$0xff] %v1181
    %1374 = vst [vmem:[#allocation2 + $0x13c] sm:$0xf] %v1182
    %1375 = vst [vmem:[#allocation2 + $0x140] sm:$0xff] %v1183
    %1376 = vst [vmem:[#allocation2 + $0x148] sm:$0xff] %v1184
    %1377 = vst [vmem:[#allocation2 + $0x150] sm:$0xf] %v1185
    %1378 = vst [vmem:[#allocation2 + $0x154] sm:$0xff] %v1186
    %1379 = vst [vmem:[#allocation2 + $0x15c] sm:$0xff] %v1187
    %1380 = vst [vmem:[#allocation2 + $0x164] sm:$0xf] %v1188
    %1381 = vst [vmem:[#allocation2 + $0x168] sm:$0xff] %v1189
    %1382 = vst [vmem:[#allocation2 + $0x170] sm:$0xff] %v1190
    %1383 = vst [vmem:[#allocation2 + $0x178] sm:$0xf] %v1191
    %1384 = vst [vmem:[#allocation2 + $0x17c] sm:$0xff] %v1192
    %1385 = vst [vmem:[#allocation2 + $0x184] sm:$0xff] %v1193
    %1386 = vst [vmem:[#allocation2 + $0x18c] sm:$0xf] %v1194
    %1387 = vst [vmem:[#allocation2 + $0x190] sm:$0xff] %v1195
    %1388 = vst [vmem:[#allocation2 + $0x198] sm:$0xff] %v1196
    %1389 = vst [vmem:[#allocation2 + $0x1a0] sm:$0xf] %v1197
    %1390 = vst [vmem:[#allocation2 + $0x1a4] sm:$0xff] %v1198
    %1391 = vst [vmem:[#allocation2 + $0x1ac] sm:$0xff] %v1199
    %1392 = vst [vmem:[#allocation2 + $0x1b4] sm:$0xf] %v1200
    %1393 = vst [vmem:[#allocation2 + $0x1b8] sm:$0xff] %v1201
    %1394 = vst [vmem:[#allocation2 + $0x1c0] sm:$0xff] %v1202
    %1395 = vst [vmem:[#allocation2 + $0x1c8] sm:$0xf] %v1203
    %1396 = vst [vmem:[#allocation2 + $0x1cc] sm:$0xff] %v1204
    %1397 = vst [vmem:[#allocation2 + $0x1d4] sm:$0xff] %v1205
    %1398 = vst [vmem:[#allocation2 + $0x1dc] sm:$0xf] %v1206
    %1399 = vst [vmem:[#allocation2 + $0x1e0] sm:$0xff] %v1207
    %1400 = vst [vmem:[#allocation2 + $0x1e8] sm:$0xff] %v1208
    %1401 = vst [vmem:[#allocation2 + $0x1f0] sm:$0xf] %v1209
    %1402 = vst [vmem:[#allocation2 + $0x1f4] sm:$0xff] %v1210
    %1403 = vst [vmem:[#allocation2 + $0x1fc] sm:$0xff] %v1211
    %1404 = vst [vmem:[#allocation2 + $0x204] sm:$0xf] %v1212
    %1405 = vst [vmem:[#allocation2 + $0x208] sm:$0xff] %v1213
    %1406 = vst [vmem:[#allocation2 + $0x210] sm:$0xff] %v1214
    %1407 = vst [vmem:[#allocation2 + $0x218] sm:$0xf] %v1215
    %1408 = vst [vmem:[#allocation2 + $0x21c] sm:$0xff] %v1216
    %1409 = vst [vmem:[#allocation2 + $0x224] sm:$0xff] %v1217
    %1410 = vst [vmem:[#allocation2 + $0x22c] sm:$0xf] %v1218
    %1411 = vst [vmem:[#allocation2 + $0x230] sm:$0xff] %v1219
    %1412 = vst [vmem:[#allocation2 + $0x238] sm:$0xff] %v1220
    %1413 = vst [vmem:[#allocation2 + $0x240] sm:$0xf] %v1221
    %1414 = vst [vmem:[#allocation2 + $0x244] sm:$0xff] %v1222
    %1415 = vst [vmem:[#allocation2 + $0x24c] sm:$0xff] %v1223
    %1416 = vst [vmem:[#allocation2 + $0x254] sm:$0xf] %v1224
    %1417 = vst [vmem:[#allocation2 + $0x258] sm:$0xff] %v1225
    %1418 = vst [vmem:[#allocation2 + $0x260] sm:$0xff] %v1226
    %1419 = vst [vmem:[#allocation2 + $0x268] sm:$0xf] %v1227
    %1420 = vst [vmem:[#allocation2 + $0x26c] sm:$0xff] %v1228
    %1421 = vst [vmem:[#allocation2 + $0x274] sm:$0xff] %v1229
    %1422 = vst [vmem:[#allocation2 + $0x27c] sm:$0xf] %v1230
    // Predicated region
    $region14: #{tpu_custom_call.1} parent=1 // pred_check
      _
    $region15: #{tpu_custom_call.1} parent=1 // pred_check_branch
      %1424 = sbr.rel (0) target = $region17
    $region16: #{tpu_custom_call.1} parent=1 // pred_region
      %s1426 = ssub.s32 10240, 10240
      %1427 = vsyncadd [#allocation3], %s1426
      %s1428 = sshll.u32 [#allocation2], 4
      %s1429 = int_to_ptr.vmem [resolvable:$true] %s1428
      %1434 = dma.vmem_to_hbm [thread:$0]  %s1429, 10240, %s3, [#allocation3], 320, 320, 20
    $region17: #{tpu_custom_call.1} parent=1 // pred_fallthru
      _
    // Predicated region
    $region18: #{tpu_custom_call.1} parent=1 // pred_check
      _
    $region19: #{tpu_custom_call.1} parent=1 // pred_check_branch
      %1436 = sbr.rel (0) target = $region21
    $region20: #{tpu_custom_call.1} parent=1 // pred_region
      %1437 = dma.done [#allocation3], 10240
    $region21: #{tpu_custom_call.1} parent=1 // pred_fallthru
      _
    %1438 = vsyncpa [#allocation3], 1

</llo_original>
